<compile_context>
chip_gen: v7x
topology: tpu7x:2x2x1
jax: 0.10.0
libtpu: 0.0.40
codegen_flags: <defaults>
</compile_context>

<pallas_src>
import functools

import jax
import jax.numpy as jnp
from jax.experimental import pallas as pl
from jax.experimental.pallas import tpu as pltpu

C_IN = 128
C_HID = 64


def _round_up(x, m):
    return ((x + m - 1) // m) * m


def cnn_kernel(x_ref, w1_ref, b1_ref, w2_ref, b2_ref, o_ref):
    # x_ref : (TILE_N, 128) f32 (streamed)   w1_ref: (128, 64) bf16 (resident)
    # b1_ref: (1, 64)  f32 (resident)        w2_ref: (1, 64)  f32 (resident)
    # b2_ref: (1, 1)   f32 (SMEM scalar)     o_ref : (1, 1, TILE_N) f32
    #
    # In-kernel bf16 cast (hidden under the HBM-bound DMA); accumulate in f32.
    x = x_ref[...].astype(jnp.bfloat16)
    h = jnp.dot(x, w1_ref[...], preferred_element_type=jnp.float32)
    h = jnp.maximum(h + b1_ref[...], 0.0)                  # ReLU, (TILE_N, 64) f32

    # Layer 2 (64 -> 1): contract hidden dim of w2 (1, 64) with hidden dim of
    # h (TILE_N, 64) -> lane-dense (1, TILE_N) row (trans-b MXU matmul), so the
    # output store is a full-width vst instead of a masked (TILE_N, 1) store.
    o = jax.lax.dot_general(
        w2_ref[...], h,
        dimension_numbers=(((1,), (1,)), ((), ())),
        preferred_element_type=jnp.float32,
    )                                                      # (1, TILE_N)
    o_ref[...] = (o + b2_ref[0, 0])[None].astype(o_ref.dtype)


def _default_tile_cap():
    # Per-generation cap: v5e has a 16 MiB default scoped-VMEM budget and
    # ~0.8 TB/s HBM; v6e/v7x have the headroom for 16K-row tiles.
    try:
        kind = jax.devices()[0].device_kind.lower()
    except Exception:
        kind = ""
    if "v5" in kind:
        return 4096
    return 16384


def _pick_tile_n(n, cap):
    n8 = _round_up(max(n, 1), 8)
    if n8 <= 512:
        return n8                       # tiny batch: single small tile
    # Multiple of 512 (lane-dense output); keep >= 2 tiles on large batches so
    # the "parallel" batch axis can shard across both v7x TensorCores.
    two_tile_cap = _round_up(-(-n // 2), 512)
    return max(512, min(cap, two_tile_cap, _round_up(n, 512)))


def _vmem_limit_bytes(tile_n):
    hid_pad = _round_up(C_HID, 128)
    need = (
        2 * tile_n * C_IN * 4                 # double-buffered f32 x tiles
        + tile_n * C_IN * 2                   # in-kernel bf16 copy of x
        + tile_n * hid_pad * 4                # lane-padded f32 hidden activations
        + 2 * _round_up(tile_n, 128) * 4      # double-buffered (1,1,TILE_N) out
        + C_IN * C_HID * 2 + 4 * hid_pad * 4  # weights / biases (generous)
    )
    return int(min(max((need * 3) // 2, 16 << 20), 64 << 20))


@functools.partial(jax.jit, static_argnames=("tile_n",))
def _cnn_forward_impl(feature, w1, b1, w2, b2, *, tile_n):
    n, c_in = feature.shape
    c_hid = w1.shape[0]
    num_tiles = pl.cdiv(n, tile_n)

    # Tiny parameter prep (matmul-ready layouts); negligible next to x traffic.
    w1t = jnp.transpose(w1).astype(jnp.bfloat16)           # (128, 64)
    b1_2d = b1.reshape(1, c_hid).astype(jnp.float32)       # (1, 64)
    w2_row = w2.reshape(1, c_hid).astype(jnp.float32)      # (1, 64)
    b2_2d = b2.reshape(1, 1).astype(jnp.float32)           # (1, 1) -> SMEM scalar

    cost = pl.CostEstimate(
        flops=2 * n * c_in * c_hid + 2 * n * c_hid,
        transcendentals=0,
        bytes_accessed=n * c_in * 4 + n * 4 + c_in * c_hid * 2 + 3 * c_hid * 4,
    )

    out = pl.pallas_call(
        cnn_kernel,
        out_shape=jax.ShapeDtypeStruct((num_tiles, 1, tile_n), jnp.float32),
        grid=(num_tiles,),
        in_specs=[
            pl.BlockSpec((tile_n, c_in), lambda i: (i, 0)),     # streamed f32 x
            pl.BlockSpec((c_in, c_hid), lambda i: (0, 0)),      # resident W1
            pl.BlockSpec((1, c_hid), lambda i: (0, 0)),         # resident b1
            pl.BlockSpec((1, c_hid), lambda i: (0, 0)),         # resident W2 row
            pl.BlockSpec(memory_space=pltpu.MemorySpace.SMEM),  # b2 scalar
        ],
        out_specs=pl.BlockSpec((1, 1, tile_n), lambda i: (i, 0, 0)),  # lane-dense
        compiler_params=pltpu.CompilerParams(
            dimension_semantics=("parallel",),
            vmem_limit_bytes=_vmem_limit_bytes(tile_n),
        ),
        cost_estimate=cost,
    )(feature, w1t, b1_2d, w2_row, b2_2d)

    # (num_tiles, 1, TILE_N) row-major == batch order; trim tail rows (garbage
    # from the final partial block's out-of-bounds reads) and return (N, 1).
    return out.reshape(num_tiles * tile_n, 1)[:n].astype(feature.dtype)


def cnn_forward(feature, w1, b1, w2, b2, *, tile_n=None):
    """feature: (N, 128). w1: (64, 128), b1: (64,), w2: (1, 64), b2: (1,)."""
    if tile_n is None:
        tile_n = _pick_tile_n(feature.shape[0], _default_tile_cap())
    return _cnn_forward_impl(feature, w1, b1, w2, b2, tile_n=tile_n)


if __name__ == "__main__":
    key = jax.random.PRNGKey(0)
    k_x, k_w1, k_b1, k_w2, k_b2 = jax.random.split(key, 5)

    N, C_OUT = 8, 1

    feature = jax.random.normal(k_x, (N, C_IN), dtype=jnp.float32)
    # Deterministic synthetic parameters (shapes match nn.Conv1d weights, k=1).
    w1 = jax.random.normal(k_w1, (C_HID, C_IN), dtype=jnp.float32) * 0.05   # (64, 128)
    b1 = jax.random.normal(k_b1, (C_HID,), dtype=jnp.float32) * 0.05        # (64,)
    w2 = jax.random.normal(k_w2, (C_OUT, C_HID), dtype=jnp.float32) * 0.05  # (1, 64)
    b2 = jax.random.normal(k_b2, (C_OUT,), dtype=jnp.float32) * 0.05        # (1,)

    out = jax.block_until_ready(cnn_forward(feature, w1, b1, w2, b2))

    # Pure-JAX f32 reference (eval-mode forward).  The kernel does the layer-1
    # matmul in bf16 (in-kernel cast), so compare with a bf16-sized tolerance.
    h_ref = jnp.maximum(feature @ w1.T + b1, 0.0)
    ref = h_ref @ w2.T + b2                                  # (N, 1)
    assert out.shape == (N, 1), out.shape
    assert jnp.allclose(out, ref, atol=3e-2, rtol=3e-2), (
        f"mismatch vs reference: max abs err {jnp.max(jnp.abs(out - ref)):.3e}")

    print("KERNEL_OK")
</pallas_src>

<mosaic_0001>
module attributes {stable_mosaic.version = 11 : i64} {
  func.func @cnn_kernel(%arg0: i32, %arg1: memref<8x128xf32, #tpu.memory_space<vmem>>, %arg2: memref<128x64xbf16, #tpu.memory_space<vmem>>, %arg3: memref<1x64xf32, #tpu.memory_space<vmem>>, %arg4: memref<1x64xf32, #tpu.memory_space<vmem>>, %arg5: memref<1x1xf32, #tpu.memory_space<smem>>, %arg6: memref<1x1x8xf32, #tpu.memory_space<vmem>>) attributes {dimension_semantics = [#tpu.dimension_semantics<parallel>], iteration_bounds = array<i64: 1>, scalar_prefetch = 0 : i64, scratch_operands = 0 : i64, tpu.core_type = #tpu.core_type<tc>, window_params = [{transform_indices = @transform_0, window_bounds = array<i64: 8, 128>}, {pipeline_mode = #tpu.pipeline_mode<synchronous>, transform_indices = @transform_1, window_bounds = array<i64: 128, 64>}, {pipeline_mode = #tpu.pipeline_mode<synchronous>, transform_indices = @transform_2, window_bounds = array<i64: 1, 64>}, {pipeline_mode = #tpu.pipeline_mode<synchronous>, transform_indices = @transform_3, window_bounds = array<i64: 1, 64>}, {transform_indices = @transform_4, window_bounds = array<i64: 1, 1>}, {transform_indices = @transform_5, window_bounds = array<i64: 1, 1, 8>}]} {
    %c0 = arith.constant 0 : index
    %c0_0 = arith.constant 0 : index
    %0 = vector.load %arg1[%c0, %c0_0] : memref<8x128xf32, #tpu.memory_space<vmem>>, vector<8x128xf32>
    %1 = arith.truncf %0 : vector<8x128xf32> to vector<8x128xbf16>
    %c0_1 = arith.constant 0 : index
    %c0_2 = arith.constant 0 : index
    %2 = vector.load %arg2[%c0_1, %c0_2] : memref<128x64xbf16, #tpu.memory_space<vmem>>, vector<128x64xbf16>
    %cst = arith.constant dense<0.000000e+00> : vector<8x64xf32>
    %3 = tpu.matmul %1, %2, %cst {dimension_numbers = #tpu.dot_dimension_numbers<[1], [0], [0], [1], [0, 0, 1, 1], [], []>} : vector<8x128xbf16>, vector<128x64xbf16>, vector<8x64xf32> -> vector<8x64xf32>
    %c0_3 = arith.constant 0 : index
    %c0_4 = arith.constant 0 : index
    %4 = vector.load %arg3[%c0_3, %c0_4] : memref<1x64xf32, #tpu.memory_space<vmem>>, vector<1x64xf32>
    %5 = vector.broadcast %4 : vector<1x64xf32> to vector<8x64xf32>
    %6 = arith.addf %3, %5 : vector<8x64xf32>
    %cst_5 = arith.constant 0.000000e+00 : f32
    %7 = vector.broadcast %cst_5 : f32 to vector<8x64xf32>
    %8 = arith.maximumf %6, %7 : vector<8x64xf32>
    %c0_6 = arith.constant 0 : index
    %c0_7 = arith.constant 0 : index
    %9 = vector.load %arg4[%c0_6, %c0_7] : memref<1x64xf32, #tpu.memory_space<vmem>>, vector<1x64xf32>
    %cst_8 = arith.constant dense<0.000000e+00> : vector<1x8xf32>
    %10 = tpu.matmul %9, %8, %cst_8 {dimension_numbers = #tpu.dot_dimension_numbers<[1], [1], [0], [0], [0, 0, 1, 0], [], []>} : vector<1x64xf32>, vector<8x64xf32>, vector<1x8xf32> -> vector<1x8xf32>
    %c0_9 = arith.constant 0 : index
    %c0_10 = arith.constant 0 : index
    %11 = memref.load %arg5[%c0_9, %c0_10] : memref<1x1xf32, #tpu.memory_space<smem>>
    %12 = vector.broadcast %11 : f32 to vector<1x8xf32>
    %13 = arith.addf %10, %12 : vector<1x8xf32>
    %14 = vector.shape_cast %13 : vector<1x8xf32> to vector<1x1x8xf32>
    %c0_11 = arith.constant 0 : index
    %c0_12 = arith.constant 0 : index
    %c0_13 = arith.constant 0 : index
    %15 = vector.load %arg6[%c0_11, %c0_12, %c0_13] : memref<1x1x8xf32, #tpu.memory_space<vmem>>, vector<1x1x8xf32>
    tpu.vector_store %arg6[%c0_11, %c0_12, %c0_13], %14 {strides = array<i32>} : memref<1x1x8xf32, #tpu.memory_space<vmem>>, vector<1x1x8xf32>,
    return
  }
  func.func @transform_0(%arg0: i32) -> (i32, i32) {
    %c0_i32 = arith.constant 0 : i32
    %c0_i32_0 = arith.constant 0 : i32
    return %arg0, %c0_i32 : i32, i32
  }
  func.func @transform_1(%arg0: i32) -> (i32, i32) {
    %c0_i32 = arith.constant 0 : i32
    %c0_i32_0 = arith.constant 0 : i32
    %c0_i32_1 = arith.constant 0 : i32
    return %c0_i32, %c0_i32_0 : i32, i32
  }
  func.func @transform_2(%arg0: i32) -> (i32, i32) {
    %c0_i32 = arith.constant 0 : i32
    %c0_i32_0 = arith.constant 0 : i32
    %c0_i32_1 = arith.constant 0 : i32
    return %c0_i32, %c0_i32_0 : i32, i32
  }
  func.func @transform_3(%arg0: i32) -> (i32, i32) {
    %c0_i32 = arith.constant 0 : i32
    %c0_i32_0 = arith.constant 0 : i32
    %c0_i32_1 = arith.constant 0 : i32
    return %c0_i32, %c0_i32_0 : i32, i32
  }
  func.func @transform_4(%arg0: i32) -> (i32, i32) {
    %c0_i32 = arith.constant 0 : i32
    %c0_i32_0 = arith.constant 0 : i32
    %c0_i32_1 = arith.constant 0 : i32
    return %c0_i32, %c0_i32_0 : i32, i32
  }
  func.func @transform_5(%arg0: i32) -> (i32, i32, i32) {
    %c0_i32 = arith.constant 0 : i32
    %c0_i32_0 = arith.constant 0 : i32
    %c0_i32_1 = arith.constant 0 : i32
    return %arg0, %c0_i32, %c0_i32_0 : i32, i32, i32
  }
}

</mosaic_0001>

<llo_original>
// kernel: _cnn_forward_impl.1
$region0: #{_cnn_forward_impl.1}
  #allocation0 [shape = 'u32[]', space=smem, size = 0x4, offset = 0x4, fixed_abs, tag = 'smem constant byte address 0x4 - core index']
  #allocation1 [shape = 'u32[144,128]{1,0:T(1,128)}', space=vmem, size = 0x12000, scoped, tag = 'internal scratch']
  #allocation2 [shape = 'f32[1,1]{1,0:T(1,128)S(6)}', space=smem, size = 0x200, scoped, tag = 'scoped memory for _cnn_forward_impl.1']
  %s0 = inlined_call_operand.vmem [shape: f32[8,128], index: 0, kind: input, shape index: {}]
  %s1 = inlined_call_operand.vmem [shape: bf16[128,64], index: 1, kind: input, shape index: {}]
  %s2 = inlined_call_operand.vmem [shape: f32[1,64], index: 2, kind: input, shape index: {}]
  %s3 = inlined_call_operand.vmem [shape: f32[1,64], index: 3, kind: input, shape index: {}]
  %s4 = inlined_call_operand.<no memory space> [shape: f32[1,1], index: 4, kind: input, shape index: {}]
  %s5 = inlined_call_operand.hbm [shape: f32[1,1,8], index: 5, kind: output, shape index: {}]
  %s6 = sld [smem:[#allocation0]]
  $region30: #{_cnn_forward_impl.1} parent=0
    _
  %s8 = ssub.s32 1, %s6
  %s9 = scalar_select 0, %s8, %s6
  %10 = sst [smem:[#allocation2]] %s4
  $region1: #{_cnn_forward_impl.1} parent=0
    #allocation3 [shape = 'u8[512]{0}', space=vmem, size = 0x400, scoped, tag = 'output window, operand 0, single buffered']
    #allocation4 [shape = 's32[1]{0}', space=sflag, size = 0x4, scoped, tag = 'scoped memory for _cnn_forward_impl.1']
    %11 = vsyncpa [#allocation4], 0
    // Predicated region
    $region2: #{_cnn_forward_impl.1} parent=1 // pred_check
      _
    $region3: #{_cnn_forward_impl.1} parent=1 // pred_check_branch
      %13 = sbr.rel (0) target = $region5
    $region4: #{_cnn_forward_impl.1} parent=1 // pred_region
      _
    $region5: #{_cnn_forward_impl.1} parent=1 // pred_fallthru
      _
    // Predicated region
    $region6: #{_cnn_forward_impl.1} parent=1 // pred_check
      _
    $region7: #{_cnn_forward_impl.1} parent=1 // pred_check_branch
      %15 = sbr.rel (0) target = $region9
    $region8: #{_cnn_forward_impl.1} parent=1 // pred_region
      _
    $region9: #{_cnn_forward_impl.1} parent=1 // pred_fallthru
      _
    // Predicated region
    $region10: #{_cnn_forward_impl.1} parent=1 // pred_check
      _
    $region11: #{_cnn_forward_impl.1} parent=1 // pred_check_branch
      %17 = sbr.rel (0) target = $region13
    $region12: #{_cnn_forward_impl.1} parent=1 // pred_region
      _
    $region13: #{_cnn_forward_impl.1} parent=1 // pred_fallthru
      _
    // Predicated region
    $region14: #{_cnn_forward_impl.1} parent=1 // pred_check
      _
    $region15: #{_cnn_forward_impl.1} parent=1 // pred_check_branch
      %19 = sbr.rel (0) target = $region17
    $region16: #{_cnn_forward_impl.1} parent=1 // pred_region
      _
    $region17: #{_cnn_forward_impl.1} parent=1 // pred_fallthru
      _
    // Predicated region
    $region18: #{_cnn_forward_impl.1} parent=1 // pred_check
      _
    $region19: #{_cnn_forward_impl.1} parent=1 // pred_check_branch
      %21 = sbr.rel (0) target = $region21
    $region20: #{_cnn_forward_impl.1} parent=1 // pred_region
      _
    $region21: #{_cnn_forward_impl.1} parent=1 // pred_fallthru
      _
    %v23 = vld [vmem:[%s0] sm:$0xff]
    %v24 = vpack.c.bf16 %v23, %v23
    %v25 = vld [vmem:[%s1] sm:$0xf]
    %v26 = vld [vmem:[%s1 + $0x4] sm:$0xf]
    %v27 = vld [vmem:[%s1 + $0x8] sm:$0xf]
    %v28 = vld [vmem:[%s1 + $0xc] sm:$0xf]
    %v29 = vld [vmem:[%s1 + $0x10] sm:$0xf]
    %v30 = vld [vmem:[%s1 + $0x14] sm:$0xf]
    %v31 = vld [vmem:[%s1 + $0x18] sm:$0xf]
    %v32 = vld [vmem:[%s1 + $0x1c] sm:$0xf]
    %v33 = vld [vmem:[%s1 + $0x20] sm:$0xf]
    %v34 = vld [vmem:[%s1 + $0x24] sm:$0xf]
    %v35 = vld [vmem:[%s1 + $0x28] sm:$0xf]
    %v36 = vld [vmem:[%s1 + $0x2c] sm:$0xf]
    %v37 = vld [vmem:[%s1 + $0x30] sm:$0xf]
    %v38 = vld [vmem:[%s1 + $0x34] sm:$0xf]
    %v39 = vld [vmem:[%s1 + $0x38] sm:$0xf]
    %v40 = vld [vmem:[%s1 + $0x3c] sm:$0xf]
    %v41 = vld [vmem:[%s2] sm:$0x1]
    %v43 = vlaneseq
    %v44 = vshrl.u32 %v43, 7
    %v45 = vsub.s32 0, %v44
    %v46 = vrot.slane %v41, %v45
    %v64 = vunpack.c.l.b16 %v25
    %v65 = vunpack.c.l.b16 %v26
    %v66 = vunpack.c.l.b16 %v27
    %v67 = vunpack.c.l.b16 %v28
    %v68 = vunpack.c.l.b16 %v29
    %v69 = vunpack.c.l.b16 %v30
    %v70 = vunpack.c.l.b16 %v31
    %v71 = vunpack.c.l.b16 %v32
    %v72 = vunpack.c.l.b16 %v33
    %v73 = vunpack.c.l.b16 %v34
    %v74 = vunpack.c.l.b16 %v35
    %v75 = vunpack.c.l.b16 %v36
    %v76 = vunpack.c.l.b16 %v37
    %v77 = vunpack.c.l.b16 %v38
    %v78 = vunpack.c.l.b16 %v39
    %v79 = vunpack.c.l.b16 %v40
    %v80 = vpack.c.b16 %v65, %v64
    %v81 = vpack.c.b16 %v67, %v66
    %v82 = vpack.c.b16 %v69, %v68
    %v83 = vpack.c.b16 %v71, %v70
    %v84 = vpack.c.b16 %v73, %v72
    %v85 = vpack.c.b16 %v75, %v74
    %v86 = vpack.c.b16 %v77, %v76
    %v87 = vpack.c.b16 %v79, %v78
    %96 = vmatprep.subr.bf16.mxu0 0
    %97 = vmatpush1.bf16.msra.mxu0 %v80
    %98 = vmatprep.subr.bf16.mxu0 0
    %99 = vmatpush1.bf16.msra.mxu0 %v81
    %100 = vmatprep.subr.bf16.mxu0 0
    %101 = vmatpush1.bf16.msra.mxu0 %v82
    %102 = vmatprep.subr.bf16.mxu0 0
    %103 = vmatpush1.bf16.msra.mxu0 %v83
    %104 = vmatprep.subr.bf16.mxu0 0
    %105 = vmatpush1.bf16.msra.mxu0 %v84
    %106 = vmatprep.subr.bf16.mxu0 0
    %107 = vmatpush1.bf16.msra.mxu0 %v85
    %108 = vmatprep.subr.bf16.mxu0 0
    %109 = vmatpush1.bf16.msra.mxu0 %v86
    %110 = vmatprep.subr.bf16.mxu0 0
    %111 = vmatpush1.bf16.msra.mxu0 %v87
    %112 = vmatprep.subr.bf16.mxu0 0
    %113 = vmatpush1.bf16.msra.mxu0 0
    %114 = vmatprep.subr.bf16.mxu0 0
    %115 = vmatpush1.bf16.msra.mxu0 0
    %116 = vmatprep.subr.bf16.mxu0 0
    %117 = vmatpush1.bf16.msra.mxu0 0
    %118 = vmatprep.subr.bf16.mxu0 0
    %119 = vmatpush1.bf16.msra.mxu0 0
    %120 = vmatprep.subr.bf16.mxu0 0
    %121 = vmatpush1.bf16.msra.mxu0 0
    %122 = vmatprep.subr.bf16.mxu0 0
    %123 = vmatpush1.bf16.msra.mxu0 0
    %124 = vmatprep.subr.bf16.mxu0 0
    %125 = vmatpush1.bf16.msra.mxu0 0
    %126 = vmatprep.subr.bf16.mxu0 0
    %127 = vmatpush1.bf16.msra.mxu0 0
    %128 = vmatprep.mubr.bf16.mxu0 0
    %129 = vmatmul.mubr.bf16.gmra.mrb[0].mxu0 %v24
    %v130 = vpop.f32.mrb[0].mxu0
    %v131 = vadd.f32 %v46, %v130
    %v132 = vpop.f32.mrb[0].mxu0
    %v133 = vpop.f32.mrb[0].mxu0
    %v134 = vpop.f32.mrb[0].mxu0
    %135 = vdwg.mxu0
    %v136 = vmax.f32 %v131, 0.0
    %v137 = vld [vmem:[%s3] sm:$0x1]
    %s138 = sld [smem:[#allocation2]]
    %v139 = vstv %s138
    %vm140 = vcmask 523264
    %v142 = vsel %vm140, %v137, 0
    %v145 = vsel %vm140, %v136, 0
    %147 = vmatprep.subr.mxu0 0.0
    %148 = vmatpush1.xpose.msra.mxu0 %v145
    %149 = vmatprep.subr.mxu0 0.0
    %150 = vmatpush1.xpose.msra.mxu0 0.0
    %151 = vmatprep.subr.mxu0 0.0
    %152 = vmatpush1.xpose.msra.mxu0 0.0
    %153 = vmatprep.subr.mxu0 0.0
    %154 = vmatpush1.xpose.msra.mxu0 0.0
    %155 = vmatprep.subr.mxu0 0.0
    %156 = vmatpush1.xpose.msra.mxu0 0.0
    %157 = vmatprep.subr.mxu0 0.0
    %158 = vmatpush1.xpose.msra.mxu0 0.0
    %159 = vmatprep.subr.mxu0 0.0
    %160 = vmatpush1.xpose.msra.mxu0 0.0
    %161 = vmatprep.subr.mxu0 0.0
    %162 = vmatpush1.xpose.msra.mxu0 0.0
    %163 = vmatprep.subr.mxu0 0.0
    %164 = vmatpush1.xpose.msra.mxu0 0.0
    %165 = vmatprep.subr.mxu0 0.0
    %166 = vmatpush1.xpose.msra.mxu0 0.0
    %167 = vmatprep.subr.mxu0 0.0
    %168 = vmatpush1.xpose.msra.mxu0 0.0
    %169 = vmatprep.subr.mxu0 0.0
    %170 = vmatpush1.xpose.msra.mxu0 0.0
    %171 = vmatprep.subr.mxu0 0.0
    %172 = vmatpush1.xpose.msra.mxu0 0.0
    %173 = vmatprep.subr.mxu0 0.0
    %174 = vmatpush1.xpose.msra.mxu0 0.0
    %175 = vmatprep.subr.mxu0 0.0
    %176 = vmatpush1.xpose.msra.mxu0 0.0
    %177 = vmatprep.subr.mxu0 0.0
    %178 = vmatpush1.xpose.msra.mxu0 0.0
    %179 = vmatprep.subr.mxu0 0.0
    %180 = vmatpush1.xpose.msra.mxu0 0.0
    %181 = vmatprep.subr.mxu0 0.0
    %182 = vmatpush1.xpose.msra.mxu0 0.0
    %183 = vmatprep.subr.mxu0 0.0
    %184 = vmatpush1.xpose.msra.mxu0 0.0
    %185 = vmatprep.subr.mxu0 0.0
    %186 = vmatpush1.xpose.msra.mxu0 0.0
    %187 = vmatprep.subr.mxu0 0.0
    %188 = vmatpush1.xpose.msra.mxu0 0.0
    %189 = vmatprep.subr.mxu0 0.0
    %190 = vmatpush1.xpose.msra.mxu0 0.0
    %191 = vmatprep.subr.mxu0 0.0
    %192 = vmatpush1.xpose.msra.mxu0 0.0
    %193 = vmatprep.subr.mxu0 0.0
    %194 = vmatpush1.xpose.msra.mxu0 0.0
    %195 = vmatprep.subr.mxu0 0.0
    %196 = vmatpush1.xpose.msra.mxu0 0.0
    %197 = vmatprep.subr.mxu0 0.0
    %198 = vmatpush1.xpose.msra.mxu0 0.0
    %199 = vmatprep.subr.mxu0 0.0
    %200 = vmatpush1.xpose.msra.mxu0 0.0
    %201 = vmatprep.subr.mxu0 0.0
    %202 = vmatpush1.xpose.msra.mxu0 0.0
    %203 = vmatprep.subr.mxu0 0.0
    %204 = vmatpush1.xpose.msra.mxu0 0.0
    %205 = vmatprep.subr.mxu0 0.0
    %206 = vmatpush1.xpose.msra.mxu0 0.0
    %207 = vmatprep.subr.mxu0 0.0
    %208 = vmatpush1.xpose.msra.mxu0 0.0
    %209 = vmatprep.subr.mxu0 0.0
    %210 = vmatpush1.xpose.msra.mxu0 0.0
    %211 = vmatprep.mubr.f32.mxu0 0.0
    %212 = vmatmul.mubr.f32.gmra.mrb[0].mxu0 %v142
    %v213 = vpop.f32.mrb[0].mxu0
    %v214 = vadd.f32 %v139, %v213
    %v215 = vpop.f32.mrb[0].mxu0
    %216 = vdwg.mxu0
    %vm217 = vcmask 57344
    %218 = vst.msk [vmem:[#allocation3] sm:$0x1] %vm217, %v214
    // Predicated region
    $region22: #{_cnn_forward_impl.1} parent=1 // pred_check
      _
    $region23: #{_cnn_forward_impl.1} parent=1 // pred_check_branch
      %220 = sbr.rel (0) target = $region25
    $region24: #{_cnn_forward_impl.1} parent=1 // pred_region
      %s222 = ssub.s32 16, 16
      %223 = vsyncadd [#allocation4], %s222
      %s225 = sshll.u32 [#allocation3], 4
      %s226 = int_to_ptr.vmem [resolvable:$true] %s225
      %228 = dma.vmem_to_hbm [thread:$0]  %s226, 16, %s5, [#allocation4]
    $region25: #{_cnn_forward_impl.1} parent=1 // pred_fallthru
      _
    // Predicated region
    $region26: #{_cnn_forward_impl.1} parent=1 // pred_check
      _
    $region27: #{_cnn_forward_impl.1} parent=1 // pred_check_branch
      %230 = sbr.rel (0) target = $region29
    $region28: #{_cnn_forward_impl.1} parent=1 // pred_region
      %231 = dma.done [#allocation4], 16
    $region29: #{_cnn_forward_impl.1} parent=1 // pred_fallthru
      _
    %232 = vsyncpa [#allocation4], 1

</llo_original>
